<compile_context>
chip_gen: v7x
topology: tpu7x:2x2x1
jax: 0.10.0
libtpu: 0.0.40
codegen_flags: <defaults>
</compile_context>

<pallas_src>
import functools

import jax
import jax.numpy as jnp
from jax import lax
from jax.experimental import pallas as pl
from jax.experimental.pallas import tpu as pltpu


def _tpu_caps():
    """(physical VMEM bytes, TensorCores per chip) with safe fallbacks."""
    vmem_cap = 128 << 20
    num_cores = 1
    try:
        info = pltpu.get_tpu_info()
        vmem_cap = int(getattr(info, "vmem_capacity_bytes", vmem_cap))
        for name in ("num_tensorcores", "tensorcores_per_chip", "num_cores",
                     "core_count"):
            v = getattr(info, name, None)
            if v:
                num_cores = int(v)
                break
    except Exception:
        pass
    if num_cores == 1:
        try:
            kind = jax.devices()[0].device_kind.lower()
            if "v7" in kind:          # v7x: 2 TensorCores per chip
                num_cores = 2
        except Exception:
            pass
    return vmem_cap, num_cores


def _choose_tn(n_pad, K, w_itemsize, num_cores, budget):
    """Output-feature tile: as few lane-dense tiles as possible (1 per TC)."""
    cands = []
    if num_cores >= 2 and n_pad % (128 * num_cores) == 0:
        cands.append(n_pad // num_cores)     # one weight slice per TensorCore
    cands.append(n_pad)                      # single step on single-TC chips
    for c in (1024, 512, 256, 128):
        if c < n_pad and n_pad % c == 0:
            cands.append(c)
    seen, ordered = set(), []
    for c in cands:
        if c not in seen:
            seen.add(c)
            ordered.append(c)
    for tn in ordered:
        if 2 * tn * K * w_itemsize <= budget:   # double-buffered weight tile
            return tn
    return 128


def _choose_tb(B, K, x_itemsize):
    """Batch tile: whole batch unless the x tile would get silly-large."""
    if 2 * B * K * x_itemsize <= (4 << 20):
        return B
    for c in (1024, 512, 256, 128, 64, 32, 16, 8):
        if B % c == 0:
            return c
    return B


def pooler_kernel(x_ref, w_ref, b_ref, o_ref, *, precision):
    # x_ref: [TB, K]      first-token activations
    # w_ref: [TN, K]      Linear weight tile (PyTorch [out, in] layout)
    # b_ref: [1, N_PAD]   full bias (fetched once; constant index_map)
    # o_ref: [TB, TN]     pooled output tile
    tn = o_ref.shape[1]
    j = pl.program_id(0)                      # feature-tile index (outer axis)
    # x @ w.T : contract both operands on their last axis (native MXU path,
    # same orientation as q @ k.T in flash attention -> no XLU transposes).
    y = lax.dot_general(
        x_ref[...], w_ref[...],
        dimension_numbers=(((1,), (1,)), ((), ())),
        preferred_element_type=jnp.float32,
        precision=precision,
    )
    n_off = pl.multiple_of(j * tn, 128)
    y = y + b_ref[:, pl.ds(n_off, tn)].astype(jnp.float32)
    o_ref[...] = jnp.tanh(y).astype(o_ref.dtype)


def roberta_prelayernorm_pooler(hidden_states, weight, bias, *, param_dtype=None):
    """hidden_states: [B, S, H]; weight: [N, H] (PyTorch Linear layout, i.e.
    out = x @ weight.T + bias); bias: [N]. Returns [B, N].

    param_dtype: optionally cast weight (and x) to e.g. jnp.bfloat16 to halve
    the dominant weight HBM traffic; accumulation stays float32."""
    B, S, H = hidden_states.shape
    N, K = weight.shape
    assert K == H and bias.shape == (N,)

    # Only the first token is needed.  In a full model this slice should fuse
    # into the producer of hidden_states (or the pooler should be fused into
    # the final encoder kernel); here it is a tiny [B, H] copy done by XLA so
    # the kernel never touches the [B, S, H] activation tensor.
    x = hidden_states[:, 0, :]                                  # [B, H]

    if param_dtype is not None:
        weight = weight.astype(param_dtype)
    if x.dtype != weight.dtype:
        x = x.astype(weight.dtype)
    use_highest = (x.dtype == jnp.float32) and (weight.dtype == jnp.float32)
    precision = lax.Precision.HIGHEST if use_highest else None

    # Pad output features to a lane-dense multiple of 128 (no-op for real
    # hidden sizes like 768/1024; only hits toy / odd configs).
    n_pad = ((N + 127) // 128) * 128
    if n_pad != N:
        weight = jnp.pad(weight, ((0, n_pad - N), (0, 0)))
        bias = jnp.pad(bias, (0, n_pad - N))
    b2d = bias.reshape(1, n_pad)

    x_bytes = jnp.dtype(x.dtype).itemsize
    w_bytes = jnp.dtype(weight.dtype).itemsize
    b_bytes = jnp.dtype(b2d.dtype).itemsize
    o_bytes = jnp.dtype(hidden_states.dtype).itemsize

    vmem_cap, num_cores = _tpu_caps()
    cap = max(vmem_cap // 2, 16 << 20)          # generation-aware scoped cap
    tn = _choose_tn(n_pad, K, w_bytes, num_cores, budget=cap - (8 << 20))
    tb = _choose_tb(B, K, x_bytes)
    grid = (n_pad // tn, B // tb)               # feature outer, batch inner

    need = (2 * tb * K * x_bytes                # x tile (double-buffered)
            + 2 * tn * K * w_bytes              # weight tile
            + 2 * n_pad * b_bytes               # bias (whole, fetched once)
            + 2 * tb * tn * o_bytes)            # output tile
    vmem_limit = int(min(need + (4 << 20), cap))

    kernel = functools.partial(pooler_kernel, precision=precision)

    out = pl.pallas_call(
        kernel,
        out_shape=jax.ShapeDtypeStruct((B, n_pad), hidden_states.dtype),
        grid_spec=pltpu.PrefetchScalarGridSpec(
            num_scalar_prefetch=0,
            grid=grid,
            in_specs=[
                pl.BlockSpec((tb, K), lambda j, i: (i, 0)),       # x
                pl.BlockSpec((tn, K), lambda j, i: (j, 0)),       # weight
                pl.BlockSpec((1, n_pad), lambda j, i: (0, 0)),    # bias (once)
            ],
            out_specs=pl.BlockSpec((tb, tn), lambda j, i: (i, j)),
        ),
        compiler_params=pltpu.CompilerParams(
            dimension_semantics=("parallel", "parallel"),
            vmem_limit_bytes=vmem_limit,
        ),
    )(x, weight, b2d)

    return out[:, :N] if n_pad != N else out


if __name__ == "__main__":
    # Small, config-consistent shapes: batch=2, seq=8, hidden=32.
    B, S, H = 2, 8, 32
    key = jax.random.PRNGKey(0)
    k_h, k_w, k_b = jax.random.split(key, 3)

    hidden_states = jax.random.normal(k_h, (B, S, H), dtype=jnp.float32)
    # Deterministic "Linear(H, H)" parameters (synthetic, not a checkpoint).
    weight = jax.random.normal(k_w, (H, H), dtype=jnp.float32) * 0.02
    bias = jax.random.normal(k_b, (H,), dtype=jnp.float32) * 0.02

    out = roberta_prelayernorm_pooler(hidden_states, weight, bias)
    out = jax.block_until_ready(out)

    # Reference check in plain JAX (same semantics as the PyTorch f32 module;
    # use HIGHEST precision so both sides compute a true float32 matmul).
    ref = jnp.tanh(
        jnp.dot(hidden_states[:, 0], weight.T, precision=lax.Precision.HIGHEST)
        + bias)
    assert out.shape == (B, H)
    assert jnp.allclose(out, ref, atol=1e-5, rtol=1e-5)

    print("KERNEL_OK")
</pallas_src>

<mosaic_0001>
module attributes {stable_mosaic.version = 11 : i64} {
  func.func @pooler_kernel(%arg0: i32, %arg1: i32, %arg2: memref<2x32xf32, #tpu.memory_space<vmem>>, %arg3: memref<128x32xf32, #tpu.memory_space<vmem>>, %arg4: memref<1x128xf32, #tpu.memory_space<vmem>>, %arg5: memref<2x128xf32, #tpu.memory_space<vmem>>) attributes {dimension_semantics = [#tpu.dimension_semantics<parallel>, #tpu.dimension_semantics<parallel>], iteration_bounds = array<i64: 1, 1>, scalar_prefetch = 0 : i64, scratch_operands = 0 : i64, tpu.core_type = #tpu.core_type<tc>, window_params = [{transform_indices = @transform_0, window_bounds = array<i64: 2, 32>}, {transform_indices = @transform_1, window_bounds = array<i64: 128, 32>}, {pipeline_mode = #tpu.pipeline_mode<synchronous>, transform_indices = @transform_2, window_bounds = array<i64: 1, 128>}, {transform_indices = @transform_3, window_bounds = array<i64: 2, 128>}]} {
    %c0 = arith.constant 0 : index
    %c0_0 = arith.constant 0 : index
    %0 = vector.load %arg2[%c0, %c0_0] : memref<2x32xf32, #tpu.memory_space<vmem>>, vector<2x32xf32>
    %c0_1 = arith.constant 0 : index
    %c0_2 = arith.constant 0 : index
    %1 = vector.load %arg3[%c0_1, %c0_2] : memref<128x32xf32, #tpu.memory_space<vmem>>, vector<128x32xf32>
    %cst = arith.constant dense<0.000000e+00> : vector<2x128xf32>
    %2 = tpu.matmul %0, %1, %cst {dimension_numbers = #tpu.dot_dimension_numbers<[1], [1], [0], [0], [0, 0, 1, 0], [], []>, precision = #tpu.contract_precision<fp32>} : vector<2x32xf32>, vector<128x32xf32>, vector<2x128xf32> -> vector<2x128xf32>
    %c128_i32 = arith.constant 128 : i32
    %3 = arith.muli %arg0, %c128_i32 : i32
    %4 = tpu.assume_multiple %3, 128 : i32
    %c0_3 = arith.constant 0 : index
    %5 = arith.index_cast %4 : i32 to index
    %6 = vector.load %arg4[%c0_3, %5] : memref<1x128xf32, #tpu.memory_space<vmem>>, vector<1x128xf32>
    %7 = vector.broadcast %6 : vector<1x128xf32> to vector<2x128xf32>
    %8 = arith.addf %2, %7 : vector<2x128xf32>
    %9 = math.tanh %8 : vector<2x128xf32>
    %c0_4 = arith.constant 0 : index
    %c0_5 = arith.constant 0 : index
    %10 = vector.load %arg5[%c0_4, %c0_5] : memref<2x128xf32, #tpu.memory_space<vmem>>, vector<2x128xf32>
    tpu.vector_store %arg5[%c0_4, %c0_5], %9 {strides = array<i32>} : memref<2x128xf32, #tpu.memory_space<vmem>>, vector<2x128xf32>,
    return
  }
  func.func @transform_0(%arg0: i32, %arg1: i32) -> (i32, i32) {
    %c0_i32 = arith.constant 0 : i32
    %c0_i32_0 = arith.constant 0 : i32
    return %arg1, %c0_i32 : i32, i32
  }
  func.func @transform_1(%arg0: i32, %arg1: i32) -> (i32, i32) {
    %c0_i32 = arith.constant 0 : i32
    %c0_i32_0 = arith.constant 0 : i32
    return %arg0, %c0_i32 : i32, i32
  }
  func.func @transform_2(%arg0: i32, %arg1: i32) -> (i32, i32) {
    %c0_i32 = arith.constant 0 : i32
    %c0_i32_0 = arith.constant 0 : i32
    %c0_i32_1 = arith.constant 0 : i32
    return %c0_i32, %c0_i32_0 : i32, i32
  }
  func.func @transform_3(%arg0: i32, %arg1: i32) -> (i32, i32) {
    %c0_i32 = arith.constant 0 : i32
    return %arg1, %arg0 : i32, i32
  }
}

</mosaic_0001>

<llo_original>
// kernel: tpu_custom_call.1
$region0: #{tpu_custom_call.1}
  #allocation0 [shape = 'u32[]', space=smem, size = 0x4, offset = 0x4, fixed_abs, tag = 'smem constant byte address 0x4 - core index']
  #allocation1 [shape = 'u32[144,128]{1,0:T(1,128)}', space=vmem, size = 0x12000, scoped, tag = 'internal scratch']
  %s0 = inlined_call_operand.vmem [shape: f32[2,32], index: 0, kind: input, shape index: {}]
  %s1 = inlined_call_operand.vmem [shape: f32[128,32], index: 1, kind: input, shape index: {}]
  %s2 = inlined_call_operand.vmem [shape: f32[1,128], index: 2, kind: input, shape index: {}]
  %s3 = inlined_call_operand.hbm [shape: f32[2,128], index: 3, kind: output, shape index: {}]
  %s4 = sld [smem:[#allocation0]]
  $region22: #{tpu_custom_call.1} parent=0
    _
  %s6 = ssub.s32 1, %s4
  %s7 = scalar_select 0, %s6, %s4
  $region1: #{tpu_custom_call.1} parent=0
    #allocation2 [shape = 'u8[1024]{0}', space=vmem, size = 0x400, scoped, tag = 'output window, operand 0, single buffered']
    #allocation3 [shape = 's32[1]{0}', space=sflag, size = 0x4, scoped, tag = 'scoped memory for tpu_custom_call.1']
    %8 = vsyncpa [#allocation3], 0
    // Predicated region
    $region2: #{tpu_custom_call.1} parent=1 // pred_check
      _
    $region3: #{tpu_custom_call.1} parent=1 // pred_check_branch
      %10 = sbr.rel (0) target = $region5
    $region4: #{tpu_custom_call.1} parent=1 // pred_region
      _
    $region5: #{tpu_custom_call.1} parent=1 // pred_fallthru
      _
    // Predicated region
    $region6: #{tpu_custom_call.1} parent=1 // pred_check
      _
    $region7: #{tpu_custom_call.1} parent=1 // pred_check_branch
      %12 = sbr.rel (0) target = $region9
    $region8: #{tpu_custom_call.1} parent=1 // pred_region
      _
    $region9: #{tpu_custom_call.1} parent=1 // pred_fallthru
      _
    // Predicated region
    $region10: #{tpu_custom_call.1} parent=1 // pred_check
      _
    $region11: #{tpu_custom_call.1} parent=1 // pred_check_branch
      %14 = sbr.rel (0) target = $region13
    $region12: #{tpu_custom_call.1} parent=1 // pred_region
      _
    $region13: #{tpu_custom_call.1} parent=1 // pred_fallthru
      _
    %v15 = vld [vmem:[%s0] sm:$0x3]
    %v16 = vld [vmem:[%s1] sm:$0xff]
    %v17 = vld [vmem:[%s1 + $0x8] sm:$0xff]
    %v18 = vld [vmem:[%s1 + $0x10] sm:$0xff]
    %v19 = vld [vmem:[%s1 + $0x18] sm:$0xff]
    %v20 = vld [vmem:[%s1 + $0x20] sm:$0xff]
    %v21 = vld [vmem:[%s1 + $0x28] sm:$0xff]
    %v22 = vld [vmem:[%s1 + $0x30] sm:$0xff]
    %v23 = vld [vmem:[%s1 + $0x38] sm:$0xff]
    %v24 = vld [vmem:[%s1 + $0x40] sm:$0xff]
    %v25 = vld [vmem:[%s1 + $0x48] sm:$0xff]
    %v26 = vld [vmem:[%s1 + $0x50] sm:$0xff]
    %v27 = vld [vmem:[%s1 + $0x58] sm:$0xff]
    %v28 = vld [vmem:[%s1 + $0x60] sm:$0xff]
    %v29 = vld [vmem:[%s1 + $0x68] sm:$0xff]
    %v30 = vld [vmem:[%s1 + $0x70] sm:$0xff]
    %v31 = vld [vmem:[%s1 + $0x78] sm:$0xff]
    %s32 = smul.u32 0, 128
    %s33 = sshra.s32 %s32, 7
    %s34 = sand.u32 %s32, 127
    %s35 = scalar_lea.vmem %s2, %s33
    %v36 = vld [vmem:[%s35] sm:$0x1]
    %v38 = vlaneseq
    %v39 = vshrl.u32 %v38, 7
    %v40 = vsub.s32 0, %v39
    %v41 = vrot.slane %v36, %v40
    %vm43 = vcmask 261120
    %v45 = vsel %vm43, %v15, 0
    %v48 = vsel %vm43, %v16, 0
    %v51 = vsel %vm43, %v17, 0
    %v54 = vsel %vm43, %v18, 0
    %v57 = vsel %vm43, %v19, 0
    %v60 = vsel %vm43, %v20, 0
    %v63 = vsel %vm43, %v21, 0
    %v66 = vsel %vm43, %v22, 0
    %v69 = vsel %vm43, %v23, 0
    %v72 = vsel %vm43, %v24, 0
    %v75 = vsel %vm43, %v25, 0
    %v78 = vsel %vm43, %v26, 0
    %v81 = vsel %vm43, %v27, 0
    %v84 = vsel %vm43, %v28, 0
    %v87 = vsel %vm43, %v29, 0
    %v90 = vsel %vm43, %v30, 0
    %v93 = vsel %vm43, %v31, 0
    %95 = vmatprep.subr.mxu0 0.0
    %v96 = vand.u32 %v48, 4294901760
    %97 = vmatpush1.xpose.msra.mxu0 %v96
    %98 = vmatprep.subr.mxu0 0.0
    %v99 = vand.u32 %v51, 4294901760
    %100 = vmatpush1.xpose.msra.mxu0 %v99
    %101 = vmatprep.subr.mxu0 0.0
    %v102 = vand.u32 %v54, 4294901760
    %103 = vmatpush1.xpose.msra.mxu0 %v102
    %104 = vmatprep.subr.mxu0 0.0
    %v105 = vand.u32 %v57, 4294901760
    %106 = vmatpush1.xpose.msra.mxu0 %v105
    %107 = vmatprep.subr.mxu0 0.0
    %v108 = vand.u32 %v60, 4294901760
    %109 = vmatpush1.xpose.msra.mxu0 %v108
    %110 = vmatprep.subr.mxu0 0.0
    %v111 = vand.u32 %v63, 4294901760
    %112 = vmatpush1.xpose.msra.mxu0 %v111
    %113 = vmatprep.subr.mxu0 0.0
    %v114 = vand.u32 %v66, 4294901760
    %115 = vmatpush1.xpose.msra.mxu0 %v114
    %116 = vmatprep.subr.mxu0 0.0
    %v117 = vand.u32 %v69, 4294901760
    %118 = vmatpush1.xpose.msra.mxu0 %v117
    %119 = vmatprep.subr.mxu0 0.0
    %v120 = vand.u32 %v72, 4294901760
    %121 = vmatpush1.xpose.msra.mxu0 %v120
    %122 = vmatprep.subr.mxu0 0.0
    %v123 = vand.u32 %v75, 4294901760
    %124 = vmatpush1.xpose.msra.mxu0 %v123
    %125 = vmatprep.subr.mxu0 0.0
    %v126 = vand.u32 %v78, 4294901760
    %127 = vmatpush1.xpose.msra.mxu0 %v126
    %128 = vmatprep.subr.mxu0 0.0
    %v129 = vand.u32 %v81, 4294901760
    %130 = vmatpush1.xpose.msra.mxu0 %v129
    %131 = vmatprep.subr.mxu0 0.0
    %v132 = vand.u32 %v84, 4294901760
    %133 = vmatpush1.xpose.msra.mxu0 %v132
    %134 = vmatprep.subr.mxu0 0.0
    %v135 = vand.u32 %v87, 4294901760
    %136 = vmatpush1.xpose.msra.mxu0 %v135
    %137 = vmatprep.subr.mxu0 0.0
    %v138 = vand.u32 %v90, 4294901760
    %139 = vmatpush1.xpose.msra.mxu0 %v138
    %140 = vmatprep.subr.mxu0 0.0
    %v141 = vand.u32 %v93, 4294901760
    %142 = vmatpush1.xpose.msra.mxu0 %v141
    %143 = vmatprep.subr.mxu0 0.0
    %144 = vmatpush1.xpose.msra.mxu0 0.0
    %145 = vmatprep.subr.mxu0 0.0
    %146 = vmatpush1.xpose.msra.mxu0 0.0
    %147 = vmatprep.subr.mxu0 0.0
    %148 = vmatpush1.xpose.msra.mxu0 0.0
    %149 = vmatprep.subr.mxu0 0.0
    %150 = vmatpush1.xpose.msra.mxu0 0.0
    %151 = vmatprep.subr.mxu0 0.0
    %152 = vmatpush1.xpose.msra.mxu0 0.0
    %153 = vmatprep.subr.mxu0 0.0
    %154 = vmatpush1.xpose.msra.mxu0 0.0
    %155 = vmatprep.subr.mxu0 0.0
    %156 = vmatpush1.xpose.msra.mxu0 0.0
    %157 = vmatprep.subr.mxu0 0.0
    %158 = vmatpush1.xpose.msra.mxu0 0.0
    %159 = vmatprep.subr.mxu0 0.0
    %160 = vmatpush1.xpose.msra.mxu0 0.0
    %161 = vmatprep.subr.mxu0 0.0
    %162 = vmatpush1.xpose.msra.mxu0 0.0
    %163 = vmatprep.subr.mxu0 0.0
    %164 = vmatpush1.xpose.msra.mxu0 0.0
    %165 = vmatprep.subr.mxu0 0.0
    %166 = vmatpush1.xpose.msra.mxu0 0.0
    %167 = vmatprep.subr.mxu0 0.0
    %168 = vmatpush1.xpose.msra.mxu0 0.0
    %169 = vmatprep.subr.mxu0 0.0
    %170 = vmatpush1.xpose.msra.mxu0 0.0
    %171 = vmatprep.subr.mxu0 0.0
    %172 = vmatpush1.xpose.msra.mxu0 0.0
    %173 = vmatprep.subr.mxu0 0.0
    %174 = vmatpush1.xpose.msra.mxu0 0.0
    %175 = vmatprep.mubr.f32.mxu0 0.0
    %v176 = vand.u32 %v45, 4294901760
    %v177 = vsub.f32 %v45, %v176
    %v178 = vand.u32 %v177, 4294901760
    %v179 = vsub.f32 %v177, %v178
    %v180 = vand.u32 %v179, 4294901760
    %181 = vmatmul.mubr.f32.gmra.mrb[0].mxu0 %v180
    %v182 = vpop.f32.mrb[0].mxu0
    %v183 = vadd.f32 %v41, %v182
    %v184 = vpop.f32.mrb[0].mxu0
    %185 = vdwg.mxu0
    %186 = vmatprep.subr.mxu0 0.0
    %v187 = vand.u32 %v48, 4294901760
    %v188 = vsub.f32 %v48, %v187
    %v189 = vand.u32 %v188, 4294901760
    %v190 = vsub.f32 %v188, %v189
    %v191 = vand.u32 %v190, 4294901760
    %192 = vmatpush1.xpose.msra.mxu0 %v191
    %193 = vmatprep.subr.mxu0 0.0
    %v194 = vand.u32 %v51, 4294901760
    %v195 = vsub.f32 %v51, %v194
    %v196 = vand.u32 %v195, 4294901760
    %v197 = vsub.f32 %v195, %v196
    %v198 = vand.u32 %v197, 4294901760
    %199 = vmatpush1.xpose.msra.mxu0 %v198
    %200 = vmatprep.subr.mxu0 0.0
    %v201 = vand.u32 %v54, 4294901760
    %v202 = vsub.f32 %v54, %v201
    %v203 = vand.u32 %v202, 4294901760
    %v204 = vsub.f32 %v202, %v203
    %v205 = vand.u32 %v204, 4294901760
    %206 = vmatpush1.xpose.msra.mxu0 %v205
    %207 = vmatprep.subr.mxu0 0.0
    %v208 = vand.u32 %v57, 4294901760
    %v209 = vsub.f32 %v57, %v208
    %v210 = vand.u32 %v209, 4294901760
    %v211 = vsub.f32 %v209, %v210
    %v212 = vand.u32 %v211, 4294901760
    %213 = vmatpush1.xpose.msra.mxu0 %v212
    %214 = vmatprep.subr.mxu0 0.0
    %v215 = vand.u32 %v60, 4294901760
    %v216 = vsub.f32 %v60, %v215
    %v217 = vand.u32 %v216, 4294901760
    %v218 = vsub.f32 %v216, %v217
    %v219 = vand.u32 %v218, 4294901760
    %220 = vmatpush1.xpose.msra.mxu0 %v219
    %221 = vmatprep.subr.mxu0 0.0
    %v222 = vand.u32 %v63, 4294901760
    %v223 = vsub.f32 %v63, %v222
    %v224 = vand.u32 %v223, 4294901760
    %v225 = vsub.f32 %v223, %v224
    %v226 = vand.u32 %v225, 4294901760
    %227 = vmatpush1.xpose.msra.mxu0 %v226
    %228 = vmatprep.subr.mxu0 0.0
    %v229 = vand.u32 %v66, 4294901760
    %v230 = vsub.f32 %v66, %v229
    %v231 = vand.u32 %v230, 4294901760
    %v232 = vsub.f32 %v230, %v231
    %v233 = vand.u32 %v232, 4294901760
    %234 = vmatpush1.xpose.msra.mxu0 %v233
    %235 = vmatprep.subr.mxu0 0.0
    %v236 = vand.u32 %v69, 4294901760
    %v237 = vsub.f32 %v69, %v236
    %v238 = vand.u32 %v237, 4294901760
    %v239 = vsub.f32 %v237, %v238
    %v240 = vand.u32 %v239, 4294901760
    %241 = vmatpush1.xpose.msra.mxu0 %v240
    %242 = vmatprep.subr.mxu0 0.0
    %v243 = vand.u32 %v72, 4294901760
    %v244 = vsub.f32 %v72, %v243
    %v245 = vand.u32 %v244, 4294901760
    %v246 = vsub.f32 %v244, %v245
    %v247 = vand.u32 %v246, 4294901760
    %248 = vmatpush1.xpose.msra.mxu0 %v247
    %249 = vmatprep.subr.mxu0 0.0
    %v250 = vand.u32 %v75, 4294901760
    %v251 = vsub.f32 %v75, %v250
    %v252 = vand.u32 %v251, 4294901760
    %v253 = vsub.f32 %v251, %v252
    %v254 = vand.u32 %v253, 4294901760
    %255 = vmatpush1.xpose.msra.mxu0 %v254
    %256 = vmatprep.subr.mxu0 0.0
    %v257 = vand.u32 %v78, 4294901760
    %v258 = vsub.f32 %v78, %v257
    %v259 = vand.u32 %v258, 4294901760
    %v260 = vsub.f32 %v258, %v259
    %v261 = vand.u32 %v260, 4294901760
    %262 = vmatpush1.xpose.msra.mxu0 %v261
    %263 = vmatprep.subr.mxu0 0.0
    %v264 = vand.u32 %v81, 4294901760
    %v265 = vsub.f32 %v81, %v264
    %v266 = vand.u32 %v265, 4294901760
    %v267 = vsub.f32 %v265, %v266
    %v268 = vand.u32 %v267, 4294901760
    %269 = vmatpush1.xpose.msra.mxu0 %v268
    %270 = vmatprep.subr.mxu0 0.0
    %v271 = vand.u32 %v84, 4294901760
    %v272 = vsub.f32 %v84, %v271
    %v273 = vand.u32 %v272, 4294901760
    %v274 = vsub.f32 %v272, %v273
    %v275 = vand.u32 %v274, 4294901760
    %276 = vmatpush1.xpose.msra.mxu0 %v275
    %277 = vmatprep.subr.mxu0 0.0
    %v278 = vand.u32 %v87, 4294901760
    %v279 = vsub.f32 %v87, %v278
    %v280 = vand.u32 %v279, 4294901760
    %v281 = vsub.f32 %v279, %v280
    %v282 = vand.u32 %v281, 4294901760
    %283 = vmatpush1.xpose.msra.mxu0 %v282
    %284 = vmatprep.subr.mxu0 0.0
    %v285 = vand.u32 %v90, 4294901760
    %v286 = vsub.f32 %v90, %v285
    %v287 = vand.u32 %v286, 4294901760
    %v288 = vsub.f32 %v286, %v287
    %v289 = vand.u32 %v288, 4294901760
    %290 = vmatpush1.xpose.msra.mxu0 %v289
    %291 = vmatprep.subr.mxu0 0.0
    %v292 = vand.u32 %v93, 4294901760
    %v293 = vsub.f32 %v93, %v292
    %v294 = vand.u32 %v293, 4294901760
    %v295 = vsub.f32 %v293, %v294
    %v296 = vand.u32 %v295, 4294901760
    %297 = vmatpush1.xpose.msra.mxu0 %v296
    %298 = vmatprep.subr.mxu0 0.0
    %299 = vmatpush1.xpose.msra.mxu0 0.0
    %300 = vmatprep.subr.mxu0 0.0
    %301 = vmatpush1.xpose.msra.mxu0 0.0
    %302 = vmatprep.subr.mxu0 0.0
    %303 = vmatpush1.xpose.msra.mxu0 0.0
    %304 = vmatprep.subr.mxu0 0.0
    %305 = vmatpush1.xpose.msra.mxu0 0.0
    %306 = vmatprep.subr.mxu0 0.0
    %307 = vmatpush1.xpose.msra.mxu0 0.0
    %308 = vmatprep.subr.mxu0 0.0
    %309 = vmatpush1.xpose.msra.mxu0 0.0
    %310 = vmatprep.subr.mxu0 0.0
    %311 = vmatpush1.xpose.msra.mxu0 0.0
    %312 = vmatprep.subr.mxu0 0.0
    %313 = vmatpush1.xpose.msra.mxu0 0.0
    %314 = vmatprep.subr.mxu0 0.0
    %315 = vmatpush1.xpose.msra.mxu0 0.0
    %316 = vmatprep.subr.mxu0 0.0
    %317 = vmatpush1.xpose.msra.mxu0 0.0
    %318 = vmatprep.subr.mxu0 0.0
    %319 = vmatpush1.xpose.msra.mxu0 0.0
    %320 = vmatprep.subr.mxu0 0.0
    %321 = vmatpush1.xpose.msra.mxu0 0.0
    %322 = vmatprep.subr.mxu0 0.0
    %323 = vmatpush1.xpose.msra.mxu0 0.0
    %324 = vmatprep.subr.mxu0 0.0
    %325 = vmatpush1.xpose.msra.mxu0 0.0
    %326 = vmatprep.subr.mxu0 0.0
    %327 = vmatpush1.xpose.msra.mxu0 0.0
    %328 = vmatprep.subr.mxu0 0.0
    %329 = vmatpush1.xpose.msra.mxu0 0.0
    %330 = vmatprep.mubr.f32.mxu0 0.0
    %v331 = vand.u32 %v45, 4294901760
    %332 = vmatmul.mubr.f32.gmra.mrb[0].mxu0 %v331
    %v333 = vpop.f32.mrb[0].mxu0
    %v334 = vadd.f32 %v183, %v333
    %v335 = vpop.f32.mrb[0].mxu0
    %336 = vdwg.mxu0
    %337 = vmatprep.subr.mxu0 0.0
    %v338 = vand.u32 %v48, 4294901760
    %v339 = vsub.f32 %v48, %v338
    %340 = vmatpush1.xpose.msra.mxu0 %v339
    %341 = vmatprep.subr.mxu0 0.0
    %v342 = vand.u32 %v51, 4294901760
    %v343 = vsub.f32 %v51, %v342
    %344 = vmatpush1.xpose.msra.mxu0 %v343
    %345 = vmatprep.subr.mxu0 0.0
    %v346 = vand.u32 %v54, 4294901760
    %v347 = vsub.f32 %v54, %v346
    %348 = vmatpush1.xpose.msra.mxu0 %v347
    %349 = vmatprep.subr.mxu0 0.0
    %v350 = vand.u32 %v57, 4294901760
    %v351 = vsub.f32 %v57, %v350
    %352 = vmatpush1.xpose.msra.mxu0 %v351
    %353 = vmatprep.subr.mxu0 0.0
    %v354 = vand.u32 %v60, 4294901760
    %v355 = vsub.f32 %v60, %v354
    %356 = vmatpush1.xpose.msra.mxu0 %v355
    %357 = vmatprep.subr.mxu0 0.0
    %v358 = vand.u32 %v63, 4294901760
    %v359 = vsub.f32 %v63, %v358
    %360 = vmatpush1.xpose.msra.mxu0 %v359
    %361 = vmatprep.subr.mxu0 0.0
    %v362 = vand.u32 %v66, 4294901760
    %v363 = vsub.f32 %v66, %v362
    %364 = vmatpush1.xpose.msra.mxu0 %v363
    %365 = vmatprep.subr.mxu0 0.0
    %v366 = vand.u32 %v69, 4294901760
    %v367 = vsub.f32 %v69, %v366
    %368 = vmatpush1.xpose.msra.mxu0 %v367
    %369 = vmatprep.subr.mxu0 0.0
    %v370 = vand.u32 %v72, 4294901760
    %v371 = vsub.f32 %v72, %v370
    %372 = vmatpush1.xpose.msra.mxu0 %v371
    %373 = vmatprep.subr.mxu0 0.0
    %v374 = vand.u32 %v75, 4294901760
    %v375 = vsub.f32 %v75, %v374
    %376 = vmatpush1.xpose.msra.mxu0 %v375
    %377 = vmatprep.subr.mxu0 0.0
    %v378 = vand.u32 %v78, 4294901760
    %v379 = vsub.f32 %v78, %v378
    %380 = vmatpush1.xpose.msra.mxu0 %v379
    %381 = vmatprep.subr.mxu0 0.0
    %v382 = vand.u32 %v81, 4294901760
    %v383 = vsub.f32 %v81, %v382
    %384 = vmatpush1.xpose.msra.mxu0 %v383
    %385 = vmatprep.subr.mxu0 0.0
    %v386 = vand.u32 %v84, 4294901760
    %v387 = vsub.f32 %v84, %v386
    %388 = vmatpush1.xpose.msra.mxu0 %v387
    %389 = vmatprep.subr.mxu0 0.0
    %v390 = vand.u32 %v87, 4294901760
    %v391 = vsub.f32 %v87, %v390
    %392 = vmatpush1.xpose.msra.mxu0 %v391
    %393 = vmatprep.subr.mxu0 0.0
    %v394 = vand.u32 %v90, 4294901760
    %v395 = vsub.f32 %v90, %v394
    %396 = vmatpush1.xpose.msra.mxu0 %v395
    %397 = vmatprep.subr.mxu0 0.0
    %v398 = vand.u32 %v93, 4294901760
    %v399 = vsub.f32 %v93, %v398
    %400 = vmatpush1.xpose.msra.mxu0 %v399
    %401 = vmatprep.subr.mxu0 0.0
    %402 = vmatpush1.xpose.msra.mxu0 0.0
    %403 = vmatprep.subr.mxu0 0.0
    %404 = vmatpush1.xpose.msra.mxu0 0.0
    %405 = vmatprep.subr.mxu0 0.0
    %406 = vmatpush1.xpose.msra.mxu0 0.0
    %407 = vmatprep.subr.mxu0 0.0
    %408 = vmatpush1.xpose.msra.mxu0 0.0
    %409 = vmatprep.subr.mxu0 0.0
    %410 = vmatpush1.xpose.msra.mxu0 0.0
    %411 = vmatprep.subr.mxu0 0.0
    %412 = vmatpush1.xpose.msra.mxu0 0.0
    %413 = vmatprep.subr.mxu0 0.0
    %414 = vmatpush1.xpose.msra.mxu0 0.0
    %415 = vmatprep.subr.mxu0 0.0
    %416 = vmatpush1.xpose.msra.mxu0 0.0
    %417 = vmatprep.subr.mxu0 0.0
    %418 = vmatpush1.xpose.msra.mxu0 0.0
    %419 = vmatprep.subr.mxu0 0.0
    %420 = vmatpush1.xpose.msra.mxu0 0.0
    %421 = vmatprep.subr.mxu0 0.0
    %422 = vmatpush1.xpose.msra.mxu0 0.0
    %423 = vmatprep.subr.mxu0 0.0
    %424 = vmatpush1.xpose.msra.mxu0 0.0
    %425 = vmatprep.subr.mxu0 0.0
    %426 = vmatpush1.xpose.msra.mxu0 0.0
    %427 = vmatprep.subr.mxu0 0.0
    %428 = vmatpush1.xpose.msra.mxu0 0.0
    %429 = vmatprep.subr.mxu0 0.0
    %430 = vmatpush1.xpose.msra.mxu0 0.0
    %431 = vmatprep.subr.mxu0 0.0
    %432 = vmatpush1.xpose.msra.mxu0 0.0
    %433 = vmatprep.mubr.f32.mxu0 0.0
    %v434 = vand.u32 %v45, 4294901760
    %v435 = vsub.f32 %v45, %v434
    %436 = vmatmul.mubr.f32.gmra.mrb[0].mxu0 %v435
    %v437 = vpop.f32.mrb[0].mxu0
    %v438 = vadd.f32 %v334, %v437
    %v439 = vpop.f32.mrb[0].mxu0
    %440 = vdwg.mxu0
    %441 = vmatprep.subr.mxu0 0.0
    %v442 = vand.u32 %v48, 4294901760
    %443 = vmatpush1.xpose.msra.mxu0 %v442
    %444 = vmatprep.subr.mxu0 0.0
    %v445 = vand.u32 %v51, 4294901760
    %446 = vmatpush1.xpose.msra.mxu0 %v445
    %447 = vmatprep.subr.mxu0 0.0
    %v448 = vand.u32 %v54, 4294901760
    %449 = vmatpush1.xpose.msra.mxu0 %v448
    %450 = vmatprep.subr.mxu0 0.0
    %v451 = vand.u32 %v57, 4294901760
    %452 = vmatpush1.xpose.msra.mxu0 %v451
    %453 = vmatprep.subr.mxu0 0.0
    %v454 = vand.u32 %v60, 4294901760
    %455 = vmatpush1.xpose.msra.mxu0 %v454
    %456 = vmatprep.subr.mxu0 0.0
    %v457 = vand.u32 %v63, 4294901760
    %458 = vmatpush1.xpose.msra.mxu0 %v457
    %459 = vmatprep.subr.mxu0 0.0
    %v460 = vand.u32 %v66, 4294901760
    %461 = vmatpush1.xpose.msra.mxu0 %v460
    %462 = vmatprep.subr.mxu0 0.0
    %v463 = vand.u32 %v69, 4294901760
    %464 = vmatpush1.xpose.msra.mxu0 %v463
    %465 = vmatprep.subr.mxu0 0.0
    %v466 = vand.u32 %v72, 4294901760
    %467 = vmatpush1.xpose.msra.mxu0 %v466
    %468 = vmatprep.subr.mxu0 0.0
    %v469 = vand.u32 %v75, 4294901760
    %470 = vmatpush1.xpose.msra.mxu0 %v469
    %471 = vmatprep.subr.mxu0 0.0
    %v472 = vand.u32 %v78, 4294901760
    %473 = vmatpush1.xpose.msra.mxu0 %v472
    %474 = vmatprep.subr.mxu0 0.0
    %v475 = vand.u32 %v81, 4294901760
    %476 = vmatpush1.xpose.msra.mxu0 %v475
    %477 = vmatprep.subr.mxu0 0.0
    %v478 = vand.u32 %v84, 4294901760
    %479 = vmatpush1.xpose.msra.mxu0 %v478
    %480 = vmatprep.subr.mxu0 0.0
    %v481 = vand.u32 %v87, 4294901760
    %482 = vmatpush1.xpose.msra.mxu0 %v481
    %483 = vmatprep.subr.mxu0 0.0
    %v484 = vand.u32 %v90, 4294901760
    %485 = vmatpush1.xpose.msra.mxu0 %v484
    %486 = vmatprep.subr.mxu0 0.0
    %v487 = vand.u32 %v93, 4294901760
    %488 = vmatpush1.xpose.msra.mxu0 %v487
    %489 = vmatprep.subr.mxu0 0.0
    %490 = vmatpush1.xpose.msra.mxu0 0.0
    %491 = vmatprep.subr.mxu0 0.0
    %492 = vmatpush1.xpose.msra.mxu0 0.0
    %493 = vmatprep.subr.mxu0 0.0
    %494 = vmatpush1.xpose.msra.mxu0 0.0
    %495 = vmatprep.subr.mxu0 0.0
    %496 = vmatpush1.xpose.msra.mxu0 0.0
    %497 = vmatprep.subr.mxu0 0.0
    %498 = vmatpush1.xpose.msra.mxu0 0.0
    %499 = vmatprep.subr.mxu0 0.0
    %500 = vmatpush1.xpose.msra.mxu0 0.0
    %501 = vmatprep.subr.mxu0 0.0
    %502 = vmatpush1.xpose.msra.mxu0 0.0
    %503 = vmatprep.subr.mxu0 0.0
    %504 = vmatpush1.xpose.msra.mxu0 0.0
    %505 = vmatprep.subr.mxu0 0.0
    %506 = vmatpush1.xpose.msra.mxu0 0.0
    %507 = vmatprep.subr.mxu0 0.0
    %508 = vmatpush1.xpose.msra.mxu0 0.0
    %509 = vmatprep.subr.mxu0 0.0
    %510 = vmatpush1.xpose.msra.mxu0 0.0
    %511 = vmatprep.subr.mxu0 0.0
    %512 = vmatpush1.xpose.msra.mxu0 0.0
    %513 = vmatprep.subr.mxu0 0.0
    %514 = vmatpush1.xpose.msra.mxu0 0.0
    %515 = vmatprep.subr.mxu0 0.0
    %516 = vmatpush1.xpose.msra.mxu0 0.0
    %517 = vmatprep.subr.mxu0 0.0
    %518 = vmatpush1.xpose.msra.mxu0 0.0
    %519 = vmatprep.subr.mxu0 0.0
    %520 = vmatpush1.xpose.msra.mxu0 0.0
    %521 = vmatprep.mubr.f32.mxu0 0.0
    %v522 = vand.u32 %v45, 4294901760
    %v523 = vsub.f32 %v45, %v522
    %v524 = vand.u32 %v523, 4294901760
    %525 = vmatmul.mubr.f32.gmra.mrb[0].mxu0 %v524
    %v526 = vpop.f32.mrb[0].mxu0
    %v527 = vadd.f32 %v438, %v526
    %v528 = vpop.f32.mrb[0].mxu0
    %529 = vdwg.mxu0
    %530 = vmatprep.subr.mxu0 0.0
    %v531 = vand.u32 %v48, 4294901760
    %v532 = vsub.f32 %v48, %v531
    %v533 = vand.u32 %v532, 4294901760
    %534 = vmatpush1.xpose.msra.mxu0 %v533
    %535 = vmatprep.subr.mxu0 0.0
    %v536 = vand.u32 %v51, 4294901760
    %v537 = vsub.f32 %v51, %v536
    %v538 = vand.u32 %v537, 4294901760
    %539 = vmatpush1.xpose.msra.mxu0 %v538
    %540 = vmatprep.subr.mxu0 0.0
    %v541 = vand.u32 %v54, 4294901760
    %v542 = vsub.f32 %v54, %v541
    %v543 = vand.u32 %v542, 4294901760
    %544 = vmatpush1.xpose.msra.mxu0 %v543
    %545 = vmatprep.subr.mxu0 0.0
    %v546 = vand.u32 %v57, 4294901760
    %v547 = vsub.f32 %v57, %v546
    %v548 = vand.u32 %v547, 4294901760
    %549 = vmatpush1.xpose.msra.mxu0 %v548
    %550 = vmatprep.subr.mxu0 0.0
    %v551 = vand.u32 %v60, 4294901760
    %v552 = vsub.f32 %v60, %v551
    %v553 = vand.u32 %v552, 4294901760
    %554 = vmatpush1.xpose.msra.mxu0 %v553
    %555 = vmatprep.subr.mxu0 0.0
    %v556 = vand.u32 %v63, 4294901760
    %v557 = vsub.f32 %v63, %v556
    %v558 = vand.u32 %v557, 4294901760
    %559 = vmatpush1.xpose.msra.mxu0 %v558
    %560 = vmatprep.subr.mxu0 0.0
    %v561 = vand.u32 %v66, 4294901760
    %v562 = vsub.f32 %v66, %v561
    %v563 = vand.u32 %v562, 4294901760
    %564 = vmatpush1.xpose.msra.mxu0 %v563
    %565 = vmatprep.subr.mxu0 0.0
    %v566 = vand.u32 %v69, 4294901760
    %v567 = vsub.f32 %v69, %v566
    %v568 = vand.u32 %v567, 4294901760
    %569 = vmatpush1.xpose.msra.mxu0 %v568
    %570 = vmatprep.subr.mxu0 0.0
    %v571 = vand.u32 %v72, 4294901760
    %v572 = vsub.f32 %v72, %v571
    %v573 = vand.u32 %v572, 4294901760
    %574 = vmatpush1.xpose.msra.mxu0 %v573
    %575 = vmatprep.subr.mxu0 0.0
    %v576 = vand.u32 %v75, 4294901760
    %v577 = vsub.f32 %v75, %v576
    %v578 = vand.u32 %v577, 4294901760
    %579 = vmatpush1.xpose.msra.mxu0 %v578
    %580 = vmatprep.subr.mxu0 0.0
    %v581 = vand.u32 %v78, 4294901760
    %v582 = vsub.f32 %v78, %v581
    %v583 = vand.u32 %v582, 4294901760
    %584 = vmatpush1.xpose.msra.mxu0 %v583
    %585 = vmatprep.subr.mxu0 0.0
    %v586 = vand.u32 %v81, 4294901760
    %v587 = vsub.f32 %v81, %v586
    %v588 = vand.u32 %v587, 4294901760
    %589 = vmatpush1.xpose.msra.mxu0 %v588
    %590 = vmatprep.subr.mxu0 0.0
    %v591 = vand.u32 %v84, 4294901760
    %v592 = vsub.f32 %v84, %v591
    %v593 = vand.u32 %v592, 4294901760
    %594 = vmatpush1.xpose.msra.mxu0 %v593
    %595 = vmatprep.subr.mxu0 0.0
    %v596 = vand.u32 %v87, 4294901760
    %v597 = vsub.f32 %v87, %v596
    %v598 = vand.u32 %v597, 4294901760
    %599 = vmatpush1.xpose.msra.mxu0 %v598
    %600 = vmatprep.subr.mxu0 0.0
    %v601 = vand.u32 %v90, 4294901760
    %v602 = vsub.f32 %v90, %v601
    %v603 = vand.u32 %v602, 4294901760
    %604 = vmatpush1.xpose.msra.mxu0 %v603
    %605 = vmatprep.subr.mxu0 0.0
    %v606 = vand.u32 %v93, 4294901760
    %v607 = vsub.f32 %v93, %v606
    %v608 = vand.u32 %v607, 4294901760
    %609 = vmatpush1.xpose.msra.mxu0 %v608
    %610 = vmatprep.subr.mxu0 0.0
    %611 = vmatpush1.xpose.msra.mxu0 0.0
    %612 = vmatprep.subr.mxu0 0.0
    %613 = vmatpush1.xpose.msra.mxu0 0.0
    %614 = vmatprep.subr.mxu0 0.0
    %615 = vmatpush1.xpose.msra.mxu0 0.0
    %616 = vmatprep.subr.mxu0 0.0
    %617 = vmatpush1.xpose.msra.mxu0 0.0
    %618 = vmatprep.subr.mxu0 0.0
    %619 = vmatpush1.xpose.msra.mxu0 0.0
    %620 = vmatprep.subr.mxu0 0.0
    %621 = vmatpush1.xpose.msra.mxu0 0.0
    %622 = vmatprep.subr.mxu0 0.0
    %623 = vmatpush1.xpose.msra.mxu0 0.0
    %624 = vmatprep.subr.mxu0 0.0
    %625 = vmatpush1.xpose.msra.mxu0 0.0
    %626 = vmatprep.subr.mxu0 0.0
    %627 = vmatpush1.xpose.msra.mxu0 0.0
    %628 = vmatprep.subr.mxu0 0.0
    %629 = vmatpush1.xpose.msra.mxu0 0.0
    %630 = vmatprep.subr.mxu0 0.0
    %631 = vmatpush1.xpose.msra.mxu0 0.0
    %632 = vmatprep.subr.mxu0 0.0
    %633 = vmatpush1.xpose.msra.mxu0 0.0
    %634 = vmatprep.subr.mxu0 0.0
    %635 = vmatpush1.xpose.msra.mxu0 0.0
    %636 = vmatprep.subr.mxu0 0.0
    %637 = vmatpush1.xpose.msra.mxu0 0.0
    %638 = vmatprep.subr.mxu0 0.0
    %639 = vmatpush1.xpose.msra.mxu0 0.0
    %640 = vmatprep.subr.mxu0 0.0
    %641 = vmatpush1.xpose.msra.mxu0 0.0
    %642 = vmatprep.mubr.f32.mxu0 0.0
    %v643 = vand.u32 %v45, 4294901760
    %644 = vmatmul.mubr.f32.gmra.mrb[0].mxu0 %v643
    %v645 = vpop.f32.mrb[0].mxu0
    %v646 = vadd.f32 %v527, %v645
    %v647 = vpop.f32.mrb[0].mxu0
    %648 = vdwg.mxu0
    %649 = vmatprep.subr.mxu0 0.0
    %v650 = vand.u32 %v48, 4294901760
    %651 = vmatpush1.xpose.msra.mxu0 %v650
    %652 = vmatprep.subr.mxu0 0.0
    %v653 = vand.u32 %v51, 4294901760
    %654 = vmatpush1.xpose.msra.mxu0 %v653
    %655 = vmatprep.subr.mxu0 0.0
    %v656 = vand.u32 %v54, 4294901760
    %657 = vmatpush1.xpose.msra.mxu0 %v656
    %658 = vmatprep.subr.mxu0 0.0
    %v659 = vand.u32 %v57, 4294901760
    %660 = vmatpush1.xpose.msra.mxu0 %v659
    %661 = vmatprep.subr.mxu0 0.0
    %v662 = vand.u32 %v60, 4294901760
    %663 = vmatpush1.xpose.msra.mxu0 %v662
    %664 = vmatprep.subr.mxu0 0.0
    %v665 = vand.u32 %v63, 4294901760
    %666 = vmatpush1.xpose.msra.mxu0 %v665
    %667 = vmatprep.subr.mxu0 0.0
    %v668 = vand.u32 %v66, 4294901760
    %669 = vmatpush1.xpose.msra.mxu0 %v668
    %670 = vmatprep.subr.mxu0 0.0
    %v671 = vand.u32 %v69, 4294901760
    %672 = vmatpush1.xpose.msra.mxu0 %v671
    %673 = vmatprep.subr.mxu0 0.0
    %v674 = vand.u32 %v72, 4294901760
    %675 = vmatpush1.xpose.msra.mxu0 %v674
    %676 = vmatprep.subr.mxu0 0.0
    %v677 = vand.u32 %v75, 4294901760
    %678 = vmatpush1.xpose.msra.mxu0 %v677
    %679 = vmatprep.subr.mxu0 0.0
    %v680 = vand.u32 %v78, 4294901760
    %681 = vmatpush1.xpose.msra.mxu0 %v680
    %682 = vmatprep.subr.mxu0 0.0
    %v683 = vand.u32 %v81, 4294901760
    %684 = vmatpush1.xpose.msra.mxu0 %v683
    %685 = vmatprep.subr.mxu0 0.0
    %v686 = vand.u32 %v84, 4294901760
    %687 = vmatpush1.xpose.msra.mxu0 %v686
    %688 = vmatprep.subr.mxu0 0.0
    %v689 = vand.u32 %v87, 4294901760
    %690 = vmatpush1.xpose.msra.mxu0 %v689
    %691 = vmatprep.subr.mxu0 0.0
    %v692 = vand.u32 %v90, 4294901760
    %693 = vmatpush1.xpose.msra.mxu0 %v692
    %694 = vmatprep.subr.mxu0 0.0
    %v695 = vand.u32 %v93, 4294901760
    %696 = vmatpush1.xpose.msra.mxu0 %v695
    %697 = vmatprep.subr.mxu0 0.0
    %698 = vmatpush1.xpose.msra.mxu0 0.0
    %699 = vmatprep.subr.mxu0 0.0
    %700 = vmatpush1.xpose.msra.mxu0 0.0
    %701 = vmatprep.subr.mxu0 0.0
    %702 = vmatpush1.xpose.msra.mxu0 0.0
    %703 = vmatprep.subr.mxu0 0.0
    %704 = vmatpush1.xpose.msra.mxu0 0.0
    %705 = vmatprep.subr.mxu0 0.0
    %706 = vmatpush1.xpose.msra.mxu0 0.0
    %707 = vmatprep.subr.mxu0 0.0
    %708 = vmatpush1.xpose.msra.mxu0 0.0
    %709 = vmatprep.subr.mxu0 0.0
    %710 = vmatpush1.xpose.msra.mxu0 0.0
    %711 = vmatprep.subr.mxu0 0.0
    %712 = vmatpush1.xpose.msra.mxu0 0.0
    %713 = vmatprep.subr.mxu0 0.0
    %714 = vmatpush1.xpose.msra.mxu0 0.0
    %715 = vmatprep.subr.mxu0 0.0
    %716 = vmatpush1.xpose.msra.mxu0 0.0
    %717 = vmatprep.subr.mxu0 0.0
    %718 = vmatpush1.xpose.msra.mxu0 0.0
    %719 = vmatprep.subr.mxu0 0.0
    %720 = vmatpush1.xpose.msra.mxu0 0.0
    %721 = vmatprep.subr.mxu0 0.0
    %722 = vmatpush1.xpose.msra.mxu0 0.0
    %723 = vmatprep.subr.mxu0 0.0
    %724 = vmatpush1.xpose.msra.mxu0 0.0
    %725 = vmatprep.subr.mxu0 0.0
    %726 = vmatpush1.xpose.msra.mxu0 0.0
    %727 = vmatprep.subr.mxu0 0.0
    %728 = vmatpush1.xpose.msra.mxu0 0.0
    %729 = vmatprep.mubr.f32.mxu0 0.0
    %v730 = vand.u32 %v45, 4294901760
    %731 = vmatmul.mubr.f32.gmra.mrb[0].mxu0 %v730
    %v732 = vpop.f32.mrb[0].mxu0
    %v733 = vadd.f32 %v646, %v732
    %v734 = vpop.f32.mrb[0].mxu0
    %735 = vdwg.mxu0
    %v736 = vtanh.pop %v733
    %737 = vst [vmem:[#allocation2] sm:$0x3] %v736
    // Predicated region
    $region14: #{tpu_custom_call.1} parent=1 // pred_check
      _
    $region15: #{tpu_custom_call.1} parent=1 // pred_check_branch
      %739 = sbr.rel (0) target = $region17
    $region16: #{tpu_custom_call.1} parent=1 // pred_region
      %s741 = ssub.s32 32, 32
      %742 = vsyncadd [#allocation3], %s741
      %s744 = sshll.u32 [#allocation2], 4
      %s745 = int_to_ptr.vmem [resolvable:$true] %s744
      %747 = dma.vmem_to_hbm [thread:$0]  %s745, 32, %s3, [#allocation3]
    $region17: #{tpu_custom_call.1} parent=1 // pred_fallthru
      _
    // Predicated region
    $region18: #{tpu_custom_call.1} parent=1 // pred_check
      _
    $region19: #{tpu_custom_call.1} parent=1 // pred_check_branch
      %749 = sbr.rel (0) target = $region21
    $region20: #{tpu_custom_call.1} parent=1 // pred_region
      %750 = dma.done [#allocation3], 32
    $region21: #{tpu_custom_call.1} parent=1 // pred_fallthru
      _
    %751 = vsyncpa [#allocation3], 1

</llo_original>
